<compile_context>
chip_gen: v5e
topology: v5e:2x2
jax: 0.10.0
libtpu: 0.0.40
codegen_flags: <defaults>
</compile_context>

<pallas_src>
import functools

import jax
import jax.numpy as jnp
from jax.experimental import pallas as pl
from jax.experimental.pallas import tpu as pltpu


def _quant_kernel(x_ref, o_ref, *, n, inv_n, exact_div):
    # qfn.forward: round(x * n) / n   (jnp.round matches torch.round: half-to-even)
    x = x_ref[...].astype(jnp.float32)
    q = jnp.round(x * n)
    # True divide is bit-exact with PyTorch's `/ n`; multiply-by-reciprocal
    # (<=1 ulp difference) is cheaper on the VPU/EUP if the op ever turns
    # compute-bound (e.g. bf16 on very-high-bandwidth parts).
    q = q / n if exact_div else q * inv_n
    o_ref[...] = q.astype(o_ref.dtype)


_SUBLANE_BY_ITEMSIZE = {4: 8, 2: 16, 1: 32}     # packed-vreg row multiple per dtype size
_COL_CANDIDATES = (1024, 512, 256, 128)         # lane-dense widths (multiples of 128)
_MIN_STEPS = 4                                  # >=2 grid steps per TC on dual-TC parts
_MIN_SPLIT_BYTES = 512 * 1024                   # don't force extra steps on small tensors
_VMEM_LIMIT_BYTES = 32 * 1024 * 1024            # 2 bufs x (in+out) x 6 MiB = 24 MiB < 32


def _target_block_bytes():
    """Per-generation block-size target (bigger blocks on high-bandwidth parts)."""
    try:
        info = pltpu.get_tpu_info()
        vmem = int(getattr(info, "vmem_capacity_bytes", 128 << 20) or (128 << 20))
    except Exception:
        vmem = 128 << 20
    if vmem <= (96 << 20):
        # 64 MiB VMEM per TensorCore => v7x-class (~3.2 TB/s HBM per TC):
        # ~6 MiB blocks keep the ~0.35us per-grid-step overhead <10% of a step.
        return 6 << 20
    # 128 MiB VMEM (v5e/v6e): ~4 MiB blocks sit at ~86% of the HBM roofline.
    return 4 << 20


def activation_quantize(x, bit_list=(2, 4, 8), *, exact_div=True,
                        donate_input=False, block_bytes=None):
    """Pallas TPU implementation of activation_quantize_fn.forward."""
    abit = bit_list[-1]
    assert abit <= 8 or abit == 32
    if abit == 32:
        return x  # identity path, no kernel needed

    n = float(2 ** abit - 1)
    inv_n = 1.0 / n
    orig_shape = x.shape
    total = x.size
    if total == 0:
        return x
    itemsize = jnp.dtype(x.dtype).itemsize
    sm = _SUBLANE_BY_ITEMSIZE.get(itemsize, 8)

    # Widest lane-dense column count that divides the element count -> reshape
    # with zero padding copies. Partial *row* tiles are handled by Pallas block
    # masking, so rows never need rounding up to the tile size.
    cols = next((c for c in _COL_CANDIDATES if total % c == 0), None)
    x_flat = x.reshape(-1)
    if cols is None:
        # TODO(synk): non-128-divisible sizes still pay one pad + one slice copy;
        # a bulk-kernel + tiny tail patch would avoid it, but such sizes are
        # rare and small for conv activations.
        cols = 128
        padded_total = pl.cdiv(total, cols) * cols
        x_flat = jnp.pad(x_flat, (0, padded_total - total))
    else:
        padded_total = total
    rows = padded_total // cols
    x2 = x_flat.reshape(rows, cols)

    target_bytes = block_bytes if block_bytes is not None else _target_block_bytes()
    row_bytes = cols * itemsize
    tm = max(sm, (target_bytes // row_bytes) // sm * sm)
    # Force >= _MIN_STEPS grid steps for large tensors: keeps DMA/compute
    # overlap per core and gives a dual-TensorCore part >=2 blocks per core.
    # Gated so small tensors (single-TC v5e/v6e included) keep one block.
    if padded_total * itemsize >= _MIN_STEPS * _MIN_SPLIT_BYTES and rows >= _MIN_STEPS * sm:
        tm = min(tm, max(sm, pl.cdiv(pl.cdiv(rows, _MIN_STEPS), sm) * sm))
    tm = min(tm, rows)  # tiny tensors: one full-extent block

    grid = (pl.cdiv(rows, tm),)  # last block may be partial; Pallas masks it

    out = pl.pallas_call(
        functools.partial(_quant_kernel, n=n, inv_n=inv_n, exact_div=exact_div),
        out_shape=jax.ShapeDtypeStruct((rows, cols), x.dtype),
        grid_spec=pltpu.PrefetchScalarGridSpec(
            num_scalar_prefetch=0,
            grid=grid,
            in_specs=[pl.BlockSpec((tm, cols), lambda i: (i, 0))],
            out_specs=pl.BlockSpec((tm, cols), lambda i: (i, 0)),
        ),
        compiler_params=pltpu.CompilerParams(
            dimension_semantics=("parallel",),
            vmem_limit_bytes=_VMEM_LIMIT_BYTES,
        ),
        cost_estimate=pl.CostEstimate(
            flops=3 * padded_total,
            transcendentals=0,
            bytes_accessed=2 * padded_total * itemsize,
        ),
        input_output_aliases={0: 0} if donate_input else {},
    )(x2)

    out_flat = out.reshape(-1)
    if padded_total != total:
        out_flat = out_flat[:total]
    return out_flat.reshape(orig_shape)


if __name__ == "__main__":
    key = jax.random.PRNGKey(0)
    bit_list = (2, 4, 8)  # abit = 8
    n = float(2 ** bit_list[-1] - 1)

    # NCHW input as the PyTorch module would see from a conv activation
    x = jax.random.uniform(key, (2, 4, 16, 16), dtype=jnp.float32)
    y = activation_quantize(x, bit_list)
    jax.block_until_ready(y)
    y_ref = jnp.round(x * n) / n
    assert y.shape == x.shape and y.dtype == x.dtype
    assert jnp.array_equal(y, y_ref)

    # odd-sized total -> exercises the (rare) padded fallback path
    x_odd = jax.random.uniform(jax.random.PRNGKey(1), (2, 3, 7, 5), dtype=jnp.float32)
    y_odd = activation_quantize(x_odd, bit_list)
    jax.block_until_ready(y_odd)
    assert y_odd.shape == x_odd.shape
    assert jnp.array_equal(y_odd, jnp.round(x_odd * n) / n)

    # lane-aligned but not tile-aligned total -> exercises the masked partial
    # last block (no pad / no slice), forced via a small block_bytes override
    x_mid = jax.random.uniform(jax.random.PRNGKey(2), (2, 21, 32, 32), dtype=jnp.float32)
    y_mid = activation_quantize(x_mid, bit_list, block_bytes=32 * 1024)
    jax.block_until_ready(y_mid)
    assert y_mid.shape == x_mid.shape
    assert jnp.array_equal(y_mid, jnp.round(x_mid * n) / n)

    # bf16 input: kernel computes in f32 internally, output stays bf16
    x_bf = x.astype(jnp.bfloat16)
    y_bf = activation_quantize(x_bf, bit_list)
    jax.block_until_ready(y_bf)
    y_bf_ref = (jnp.round(x_bf.astype(jnp.float32) * n) / n).astype(jnp.bfloat16)
    assert y_bf.dtype == jnp.bfloat16 and jnp.array_equal(y_bf, y_bf_ref)

    # multiply-by-reciprocal option (<=1 ulp from true divide)
    y_fast = activation_quantize(x, bit_list, exact_div=False)
    jax.block_until_ready(y_fast)
    assert jnp.allclose(y_fast, y_ref, atol=1e-6)

    # donated-input option (in/out specs identical; output aliases the input)
    x_d = x + 0.0  # fresh buffer we don't reuse afterwards
    y_d = activation_quantize(x_d, bit_list, donate_input=True)
    jax.block_until_ready(y_d)
    assert jnp.array_equal(y_d, y_ref)

    # abit == 32 passthrough
    y32 = activation_quantize(x, (32,))
    jax.block_until_ready(y32)
    assert jnp.array_equal(y32, x)

    print("KERNEL_OK")
</pallas_src>

<mosaic_0001>
module attributes {stable_mosaic.version = 11 : i64} {
  func.func @_quant_kernel(%arg0: i32, %arg1: memref<2x1024xf32, #tpu.memory_space<vmem>>, %arg2: memref<2x1024xf32, #tpu.memory_space<vmem>>) attributes {dimension_semantics = [#tpu.dimension_semantics<parallel>], iteration_bounds = array<i64: 1>, scalar_prefetch = 0 : i64, scratch_operands = 0 : i64, tpu.core_type = #tpu.core_type<tc>, window_params = [{transform_indices = @transform_0, window_bounds = array<i64: 2, 1024>}, {transform_indices = @transform_1, window_bounds = array<i64: 2, 1024>}]} {
    %c0 = arith.constant 0 : index
    %c0_0 = arith.constant 0 : index
    %0 = vector.load %arg1[%c0, %c0_0] : memref<2x1024xf32, #tpu.memory_space<vmem>>, vector<2x1024xf32>
    %cst = arith.constant 2.550000e+02 : f32
    %1 = vector.broadcast %cst : f32 to vector<2x1024xf32>
    %2 = arith.mulf %0, %1 : vector<2x1024xf32>
    %3 = math.roundeven %2 : vector<2x1024xf32>
    %cst_1 = arith.constant 2.550000e+02 : f32
    %4 = vector.broadcast %cst_1 : f32 to vector<2x1024xf32>
    %5 = arith.divf %3, %4 : vector<2x1024xf32>
    %c0_2 = arith.constant 0 : index
    %c0_3 = arith.constant 0 : index
    %6 = vector.load %arg2[%c0_2, %c0_3] : memref<2x1024xf32, #tpu.memory_space<vmem>>, vector<2x1024xf32>
    tpu.vector_store %arg2[%c0_2, %c0_3], %5 {strides = array<i32>} : memref<2x1024xf32, #tpu.memory_space<vmem>>, vector<2x1024xf32>,
    return
  }
  func.func @transform_0(%arg0: i32) -> (i32, i32) {
    %c0_i32 = arith.constant 0 : i32
    %c0_i32_0 = arith.constant 0 : i32
    return %arg0, %c0_i32 : i32, i32
  }
  func.func @transform_1(%arg0: i32) -> (i32, i32) {
    %c0_i32 = arith.constant 0 : i32
    %c0_i32_0 = arith.constant 0 : i32
    return %arg0, %c0_i32 : i32, i32
  }
}

</mosaic_0001>

<llo_original>
// kernel: tpu_custom_call.1
$region0: #{tpu_custom_call.1}
  #allocation0 [shape = 'u32[]', space=smem, size = 0x4, offset = 0x4, fixed_abs, tag = 'smem constant byte address 0x4 - core index']
  #allocation1 [shape = 'u32[72,128]{1,0:T(1,128)}', space=vmem, size = 0x9000, scoped, tag = 'internal scratch']
  %s0 = inlined_call_operand.hbm [shape: f32[2,1024], index: 0, kind: input, shape index: {}]
  %s1 = inlined_call_operand.hbm [shape: f32[2,1024], index: 1, kind: output, shape index: {}]
  %s2 = sld [smem:[#allocation0]]
  $region18: #{tpu_custom_call.1} parent=0
    _
  %s4 = ssub.s32 1, %s2
  %s5 = scalar_select 0, %s4, %s2
  $region1: #{tpu_custom_call.1} parent=0
    #allocation2 [shape = 'u8[8192]{0}', space=vmem, size = 0x2000, scoped, tag = 'input window, operand 0, single buffered']
    #allocation3 [shape = 's32[1]{0}', space=sflag, size = 0x4, scoped, tag = 'scoped memory for tpu_custom_call.1']
    #allocation4 [shape = 's32[1]{0}', space=sflag, size = 0x4, scoped, tag = 'scoped memory for tpu_custom_call.1']
    #allocation5 [shape = 'u8[8192]{0}', space=vmem, size = 0x2000, scoped, tag = 'output window, operand 0, single buffered']
    %6 = vsyncpa [#allocation3], 0
    %7 = vsyncpa [#allocation4], 0
    // Predicated region
    $region2: #{tpu_custom_call.1} parent=1 // pred_check
      _
    $region3: #{tpu_custom_call.1} parent=1 // pred_check_branch
      %9 = sbr.rel (0) target = $region5
    $region4: #{tpu_custom_call.1} parent=1 // pred_region
      %11 = vsyncadd [#allocation3], 0
      %s13 = sshll.u32 %s0, 4
      %s14 = int_to_ptr.hbm [resolvable:$true] %s13
      %s15 = sshll.u32 [#allocation2], 4
      %s16 = int_to_ptr.vmem [resolvable:$true] %s15
      %18 = dma.hbm_to_vmem [thread:$0]  %s14, 256, %s16, [#allocation3]
    $region5: #{tpu_custom_call.1} parent=1 // pred_fallthru
      _
    // Predicated region
    $region6: #{tpu_custom_call.1} parent=1 // pred_check
      _
    $region7: #{tpu_custom_call.1} parent=1 // pred_check_branch
      %20 = sbr.rel (0) target = $region9
    $region8: #{tpu_custom_call.1} parent=1 // pred_region
      %22 = dma.done [#allocation3], 256
    $region9: #{tpu_custom_call.1} parent=1 // pred_fallthru
      _
    %v23 = vld [vmem:[#allocation2] sm:$0xff]
    %v24 = vld [vmem:[#allocation2 + $0x8] sm:$0xff]
    %v25 = vmul.f32 %v23, 255.0
    %v26 = vmul.f32 %v24, 255.0
    %v27 = vround.ne.pseudo %v25
    %v28 = vround.ne.pseudo %v26
    %v29 = vrcp.pop 255.0
    %v30 = vmul.f32 255.0, %v29
    %v31 = vsub.f32 1.0, %v30
    %v32 = vmul.f32 %v29, %v31
    %v33 = vadd.f32 %v29, %v32
    %vm34 = vweird.f32 %v29
    %v35 = vsel %vm34, %v29, %v33
    %v36 = vmul.f32 %v27, %v35
    %v37 = vmul.f32 %v28, %v35
    %38 = vst [vmem:[#allocation5] sm:$0xff] %v36
    %39 = vst [vmem:[#allocation5 + $0x8] sm:$0xff] %v37
    // Predicated region
    $region10: #{tpu_custom_call.1} parent=1 // pred_check
      _
    $region11: #{tpu_custom_call.1} parent=1 // pred_check_branch
      %41 = sbr.rel (0) target = $region13
    $region12: #{tpu_custom_call.1} parent=1 // pred_region
      %43 = vsyncadd [#allocation4], 0
      %s45 = sshll.u32 [#allocation5], 4
      %s46 = int_to_ptr.vmem [resolvable:$true] %s45
      %s47 = sshll.u32 %s1, 4
      %s48 = int_to_ptr.hbm [resolvable:$true] %s47
      %50 = dma.vmem_to_hbm [thread:$0]  %s46, 256, %s48, [#allocation4]
    $region13: #{tpu_custom_call.1} parent=1 // pred_fallthru
      _
    // Predicated region
    $region14: #{tpu_custom_call.1} parent=1 // pred_check
      _
    $region15: #{tpu_custom_call.1} parent=1 // pred_check_branch
      %52 = sbr.rel (0) target = $region17
    $region16: #{tpu_custom_call.1} parent=1 // pred_region
      %54 = dma.done [#allocation4], 256
    $region17: #{tpu_custom_call.1} parent=1 // pred_fallthru
      _
    %55 = vsyncpa [#allocation3], 1
    %56 = vsyncpa [#allocation4], 1

</llo_original>
